<compile_context>
chip_gen: v6e
topology: v6e:2x2x1
jax: 0.10.0
libtpu: 0.0.40
codegen_flags: <defaults>
</compile_context>

<pallas_src>
import jax
import jax.numpy as jnp
from jax.experimental import pallas as pl
from jax.experimental.pallas import tpu as pltpu

LANES = 128
_MIB = 1 << 20


def _h_swish_kernel(x_ref, o_ref):
    # Upcast intermediates to f32: VPU has huge slack in a mem-bound kernel,
    # and it matches a fp32 PyTorch module more closely for bf16/f16 inputs.
    x = x_ref[...].astype(jnp.float32)
    # relu6(x + 3) / 6  ==  clamp(x + 3, 0, 6) * (1/6)
    hs = jnp.minimum(jnp.maximum(x + 3.0, 0.0), 6.0) * (1.0 / 6.0)
    o_ref[...] = (x * hs).astype(o_ref.dtype)


def _sublane_multiple(dtype) -> int:
    # Packed-dtype sublane granularity: f32 -> 8, bf16/f16 -> 16, int8/fp8 -> 32.
    itemsize = jnp.dtype(dtype).itemsize
    return {4: 8, 2: 16, 1: 32}.get(itemsize, 8)


def _tpu_params():
    """Return (per-core VMEM capacity bytes, #TensorCores) with safe fallbacks."""
    vmem_cap = 128 * _MIB   # v5e/v6e default
    num_cores = 1           # conservative: 1 TC unless we can prove otherwise
    try:
        info = pltpu.get_tpu_info()
        cap = getattr(info, "vmem_capacity_bytes", None)
        if cap:
            vmem_cap = int(cap)
        for attr in ("num_cores", "cores_per_chip", "tensorcore_count",
                     "num_tensorcores", "core_count"):
            v = getattr(info, attr, None)
            if v:
                num_cores = int(v)
                break
    except Exception:
        pass
    if num_cores == 1:
        try:
            dev = jax.devices()[0]
            for attr in ("num_cores", "core_count"):
                v = getattr(dev, attr, None)
                if isinstance(v, int) and v > 0:
                    num_cores = v
                    break
        except Exception:
            pass
    # No current TPU has more than 2 TensorCores per chip; clamp for safety.
    num_cores = max(1, min(num_cores, 2))
    return vmem_cap, num_cores


def _h_swish_2d(x2d: jax.Array) -> jax.Array:
    """Run the Pallas kernel on a lane-dense (rows, 128) slab."""
    rows, lanes = x2d.shape
    itemsize = jnp.dtype(x2d.dtype).itemsize
    sub = _sublane_multiple(x2d.dtype)
    vmem_cap, num_cores = _tpu_params()

    def align_up(r):
        return -(-r // sub) * sub

    # Generation-aware VMEM budget (leave headroom below physical capacity).
    vmem_budget = (vmem_cap * 7) // 8          # ~112 MiB v5e/v6e, ~56 MiB v7x
    # Block sizing: in + out, each double-buffered => 4 live block buffers.
    # Aim for ~budget/6 per block so 4*block + headroom fits comfortably,
    # capped at 12 MiB (=> ~9 MiB on v7x, 12 MiB on v5e/v6e).
    target_block_bytes = min(12 * _MIB, vmem_budget // 6)
    row_bytes = lanes * itemsize
    target_rows = max(sub, (target_block_bytes // row_bytes) // sub * sub)

    if num_cores > 1:
        # Multi-TC part: size the tile so each core gets a contiguous share.
        per_core_rows = align_up(pl.cdiv(rows, num_cores))
        tile_rows = min(target_rows, per_core_rows)
    else:
        # Single TC: splitting a small input only adds grid-step overhead.
        tile_rows = min(target_rows, align_up(rows))
    tile_rows = min(tile_rows, align_up(rows))

    nblocks = pl.cdiv(rows, tile_rows)
    block_bytes = tile_rows * lanes * itemsize
    # >= 4*block + headroom, floored at the smallest default scoped limit,
    # capped below the detected per-core VMEM capacity.
    vmem_limit = int(min(max(16 * _MIB, 4 * block_bytes + 2 * _MIB), vmem_budget))

    cost = pl.CostEstimate(
        flops=5 * rows * lanes,  # add, max, min, 2x mul per element
        transcendentals=0,
        bytes_accessed=2 * rows * lanes * itemsize,
    )

    if num_cores > 1 and nblocks >= num_cores:
        # v7x / megacore: leading axis of exactly num_cores marked CORE_PARALLEL
        # so each TensorCore drives its own DMA stream over a contiguous run of
        # row blocks.  The clamp only ever repeats the last block *within* the
        # last core (never across cores), so writes stay disjoint across cores.
        bpc = pl.cdiv(nblocks, num_cores)
        last = nblocks - 1

        def idx(c, i):
            return (jnp.minimum(c * bpc + i, last), 0)

        grid = (num_cores, bpc)
        in_specs = [pl.BlockSpec((tile_rows, lanes), idx)]
        out_specs = pl.BlockSpec((tile_rows, lanes), idx)
        semantics = (pltpu.CORE_PARALLEL, pltpu.ARBITRARY)
    else:
        grid = (nblocks,)
        in_specs = [pl.BlockSpec((tile_rows, lanes), lambda i: (i, 0))]
        out_specs = pl.BlockSpec((tile_rows, lanes), lambda i: (i, 0))
        semantics = (pltpu.PARALLEL,)

    # NOTE: BlockSpecs keep the default Buffered(2) pipelining on purpose —
    # deeper buffering only burns VMEM and forces smaller blocks on v7x.
    return pl.pallas_call(
        _h_swish_kernel,
        out_shape=jax.ShapeDtypeStruct((rows, lanes), x2d.dtype),
        grid_spec=pltpu.PrefetchScalarGridSpec(
            num_scalar_prefetch=0,
            grid=grid,
            in_specs=in_specs,
            out_specs=out_specs,
        ),
        compiler_params=pltpu.CompilerParams(
            dimension_semantics=semantics,
            vmem_limit_bytes=vmem_limit,
        ),
        cost_estimate=cost,
    )(x2d)


def _h_swish_ref(x):
    return x * (jnp.clip(x + 3.0, 0.0, 6.0) / 6.0)


def h_swish(x: jax.Array) -> jax.Array:
    """Elementwise h_swish on a tensor of any shape via a Pallas TPU kernel."""
    orig_shape = x.shape
    orig_dtype = x.dtype

    total = 1
    for d in orig_shape:
        total *= d

    x_flat = x.reshape(-1)
    main = (total // LANES) * LANES

    if main == total:
        # Common case (e.g. NCHW with total a multiple of 128): no pad/slice
        # copies, just reshapes around the kernel.
        y2d = _h_swish_2d(x_flat.reshape(total // LANES, LANES))
        return y2d.reshape(orig_shape)

    # Ragged case (rare): Pallas kernel on the lane-divisible prefix, plain
    # jnp on the tiny (< 128 element) tail.  The final concatenate costs one
    # extra output read+write pass; pad-then-slice would cost more (pad +
    # slice are both full passes around an opaque pallas_call).
    # TODO(synk): fold the partial last row into the kernel with a masked
    # store on a full-size output buffer to remove the extra pass entirely.
    pieces = []
    if main > 0:
        head = _h_swish_2d(x_flat[:main].reshape(main // LANES, LANES))
        pieces.append(head.reshape(-1))
    tail = x_flat[main:]
    pieces.append(_h_swish_ref(tail.astype(jnp.float32)).astype(orig_dtype))
    return jnp.concatenate(pieces, axis=0).reshape(orig_shape)


if __name__ == "__main__":
    key = jax.random.PRNGKey(0)
    # NCHW, matching the PyTorch module's conv-style input convention.
    x = jax.random.normal(key, (2, 4, 16, 16), dtype=jnp.float32) * 4.0

    y = jax.block_until_ready(h_swish(x))

    y_ref = _h_swish_ref(x)
    assert y.shape == x.shape and y.dtype == x.dtype
    assert jnp.allclose(y, y_ref, atol=1e-6, rtol=1e-6), "mismatch vs reference"

    print("KERNEL_OK")
</pallas_src>

<mosaic_0001>
module attributes {stable_mosaic.version = 11 : i64} {
  func.func @_h_swish_kernel(%arg0: i32, %arg1: memref<16x128xf32, #tpu.memory_space<vmem>>, %arg2: memref<16x128xf32, #tpu.memory_space<vmem>>) attributes {dimension_semantics = [#tpu.dimension_semantics<parallel>], iteration_bounds = array<i64: 1>, scalar_prefetch = 0 : i64, scratch_operands = 0 : i64, tpu.core_type = #tpu.core_type<tc>, window_params = [{transform_indices = @transform_0, window_bounds = array<i64: 16, 128>}, {transform_indices = @transform_1, window_bounds = array<i64: 16, 128>}]} {
    %c0 = arith.constant 0 : index
    %c0_0 = arith.constant 0 : index
    %0 = vector.load %arg1[%c0, %c0_0] : memref<16x128xf32, #tpu.memory_space<vmem>>, vector<16x128xf32>
    %cst = arith.constant 3.000000e+00 : f32
    %1 = vector.broadcast %cst : f32 to vector<16x128xf32>
    %2 = arith.addf %0, %1 : vector<16x128xf32>
    %cst_1 = arith.constant 0.000000e+00 : f32
    %3 = vector.broadcast %cst_1 : f32 to vector<16x128xf32>
    %4 = arith.maximumf %2, %3 : vector<16x128xf32>
    %cst_2 = arith.constant 6.000000e+00 : f32
    %5 = vector.broadcast %cst_2 : f32 to vector<16x128xf32>
    %6 = arith.minimumf %4, %5 : vector<16x128xf32>
    %cst_3 = arith.constant 0.166666672 : f32
    %7 = vector.broadcast %cst_3 : f32 to vector<16x128xf32>
    %8 = arith.mulf %6, %7 : vector<16x128xf32>
    %9 = arith.mulf %0, %8 : vector<16x128xf32>
    %c0_4 = arith.constant 0 : index
    %c0_5 = arith.constant 0 : index
    %10 = vector.load %arg2[%c0_4, %c0_5] : memref<16x128xf32, #tpu.memory_space<vmem>>, vector<16x128xf32>
    tpu.vector_store %arg2[%c0_4, %c0_5], %9 {strides = array<i32>} : memref<16x128xf32, #tpu.memory_space<vmem>>, vector<16x128xf32>,
    return
  }
  func.func @transform_0(%arg0: i32) -> (i32, i32) {
    %c0_i32 = arith.constant 0 : i32
    %c0_i32_0 = arith.constant 0 : i32
    return %arg0, %c0_i32 : i32, i32
  }
  func.func @transform_1(%arg0: i32) -> (i32, i32) {
    %c0_i32 = arith.constant 0 : i32
    %c0_i32_0 = arith.constant 0 : i32
    return %arg0, %c0_i32 : i32, i32
  }
}

</mosaic_0001>

<llo_original>
// kernel: tpu_custom_call.1
$region0: #{tpu_custom_call.1}
  #allocation0 [shape = 'u32[]', space=smem, size = 0x4, offset = 0x4, fixed_abs, tag = 'smem constant byte address 0x4 - core index']
  #allocation1 [shape = 'u32[144,128]{1,0:T(1,128)}', space=vmem, size = 0x12000, scoped, tag = 'internal scratch']
  %s0 = inlined_call_operand.hbm [shape: f32[16,128], index: 0, kind: input, shape index: {}]
  %s1 = inlined_call_operand.hbm [shape: f32[16,128], index: 1, kind: output, shape index: {}]
  %s2 = sld [smem:[#allocation0]]
  $region18: #{tpu_custom_call.1} parent=0
    _
  %s4 = ssub.s32 1, %s2
  %s5 = scalar_select 0, %s4, %s2
  $region1: #{tpu_custom_call.1} parent=0
    #allocation2 [shape = 'u8[8192]{0}', space=vmem, size = 0x2000, scoped, tag = 'input window, operand 0, single buffered']
    #allocation3 [shape = 's32[1]{0}', space=sflag, size = 0x4, scoped, tag = 'scoped memory for tpu_custom_call.1']
    #allocation4 [shape = 's32[1]{0}', space=sflag, size = 0x4, scoped, tag = 'scoped memory for tpu_custom_call.1']
    #allocation5 [shape = 'u8[8192]{0}', space=vmem, size = 0x2000, scoped, tag = 'output window, operand 0, single buffered']
    %6 = vsyncpa [#allocation3], 0
    %7 = vsyncpa [#allocation4], 0
    // Predicated region
    $region2: #{tpu_custom_call.1} parent=1 // pred_check
      _
    $region3: #{tpu_custom_call.1} parent=1 // pred_check_branch
      %9 = sbr.rel (0) target = $region5
    $region4: #{tpu_custom_call.1} parent=1 // pred_region
      %s11 = ssub.s32 256, 256
      %12 = vsyncadd [#allocation3], %s11
      %s13 = sshll.u32 [#allocation2], 4
      %s14 = int_to_ptr.vmem [resolvable:$true] %s13
      %19 = dma.hbm_to_vmem [thread:$0]  %s0, 256, %s14, [#allocation3], 128, 128, 8
    $region5: #{tpu_custom_call.1} parent=1 // pred_fallthru
      _
    // Predicated region
    $region6: #{tpu_custom_call.1} parent=1 // pred_check
      _
    $region7: #{tpu_custom_call.1} parent=1 // pred_check_branch
      %21 = sbr.rel (0) target = $region9
    $region8: #{tpu_custom_call.1} parent=1 // pred_region
      %22 = dma.done [#allocation3], 256
    $region9: #{tpu_custom_call.1} parent=1 // pred_fallthru
      _
    %v23 = vld [vmem:[#allocation2] sm:$0xff]
    %v24 = vld [vmem:[#allocation2 + $0x8] sm:$0xff]
    %v25 = vadd.f32 %v23, 3.0
    %v26 = vadd.f32 %v24, 3.0
    %v27 = vmax.f32 %v25, 0.0
    %v28 = vmax.f32 %v26, 0.0
    %v29 = vmin.f32 %v27, 6.0
    %v30 = vmin.f32 %v28, 6.0
    %v31 = vmul.f32 %v29, 0.16666667
    %v32 = vmul.f32 %v30, 0.16666667
    %v33 = vmul.f32 %v23, %v31
    %v34 = vmul.f32 %v24, %v32
    %35 = vst [vmem:[#allocation5] sm:$0xff] %v33
    %36 = vst [vmem:[#allocation5 + $0x8] sm:$0xff] %v34
    // Predicated region
    $region10: #{tpu_custom_call.1} parent=1 // pred_check
      _
    $region11: #{tpu_custom_call.1} parent=1 // pred_check_branch
      %38 = sbr.rel (0) target = $region13
    $region12: #{tpu_custom_call.1} parent=1 // pred_region
      %s40 = ssub.s32 256, 256
      %41 = vsyncadd [#allocation4], %s40
      %s42 = sshll.u32 [#allocation5], 4
      %s43 = int_to_ptr.vmem [resolvable:$true] %s42
      %48 = dma.vmem_to_hbm [thread:$0]  %s43, 256, %s1, [#allocation4], 128, 128, 8
    $region13: #{tpu_custom_call.1} parent=1 // pred_fallthru
      _
    // Predicated region
    $region14: #{tpu_custom_call.1} parent=1 // pred_check
      _
    $region15: #{tpu_custom_call.1} parent=1 // pred_check_branch
      %50 = sbr.rel (0) target = $region17
    $region16: #{tpu_custom_call.1} parent=1 // pred_region
      %51 = dma.done [#allocation4], 256
    $region17: #{tpu_custom_call.1} parent=1 // pred_fallthru
      _
    %52 = vsyncpa [#allocation3], 1
    %53 = vsyncpa [#allocation4], 1

</llo_original>
